<compile_context>
chip_gen: v6e
topology: v6e:2x2x1
jax: 0.10.0
libtpu: 0.0.40
codegen_flags: <defaults>
</compile_context>

<pallas_src>
import jax
import jax.numpy as jnp
from jax.experimental import pallas as pl
from jax.experimental.pallas import tpu as pltpu


def _round_up(x, m):
    return ((x + m - 1) // m) * m


# ---------------------------------------------------------------------------
# Kernel body
# ---------------------------------------------------------------------------
def _qk_head_kernel(cls_ref, wp_ref, bp_ref, w1_ref, b1_ref, w2_ref, b2_ref,
                    pooled_ref, logits_ref):
    """Fused BERT pooler (dense + tanh) + classifier MLP for one batch tile.

    cls_ref   : [TB, Hp]   bf16  CLS hidden states
    wp_ref    : [Hp, Hp]   bf16  pooler dense weight      (resident)
    bp_ref    : [1, Hp]    f32   pooler dense bias
    w1_ref    : [Hp, H2p]  bf16  classifier layer-1 weight (resident)
    b1_ref    : [1, H2p]   f32   classifier layer-1 bias
    w2_ref    : [H2p, Lp]  bf16  classifier layer-2 weight (resident)
    b2_ref    : [1, Lp]    f32   classifier layer-2 bias
    pooled_ref: [TB, Hp]   bf16  pooled_output (tanh), lane-dense
    logits_ref: [TB, Lp]   f32   logits, lane-padded
    """
    cls = cls_ref[...]

    # BERT pooler: tanh(cls @ Wp + bp).  bf16 operands on the MXU, f32 accumulate.
    pooled_f32 = jnp.tanh(
        jnp.dot(cls, wp_ref[...], preferred_element_type=jnp.float32)
        + bp_ref[...]
    )
    # Cast once; reused for both the (bf16) writeback and the W1 matmul operand.
    pooled_bf16 = pooled_f32.astype(pooled_ref.dtype)
    pooled_ref[...] = pooled_bf16

    # Classifier: ReLU(pooled @ W1 + b1) @ W2 + b2.
    h = jnp.maximum(
        jnp.dot(pooled_bf16, w1_ref[...], preferred_element_type=jnp.float32)
        + b1_ref[...],
        0.0,
    )
    logits = (
        jnp.dot(h.astype(w2_ref.dtype), w2_ref[...],
                preferred_element_type=jnp.float32)
        + b2_ref[...]
    )
    logits_ref[...] = logits.astype(logits_ref.dtype)


# ---------------------------------------------------------------------------
# One-time parameter preparation (pad + cast hoisted out of the per-call path)
# ---------------------------------------------------------------------------
def prepare_qk_params(params, compute_dtype=jnp.bfloat16):
    """Zero-pad weights/biases to lane-aligned shapes and cast matmul operands to bf16.

    Call once (at init / parameter load); reuse the result across forward calls.
    Zero padding keeps the valid output slice exact (padded rows/cols contribute 0).
    """
    H = params["wp"].shape[0]
    H2 = params["w1"].shape[1]
    L = params["w2"].shape[1]
    Hp = _round_up(H, 128)
    H2p = _round_up(H2, 128)
    Lp = _round_up(L, 128)

    def pad2(x, rows, cols, dt):
        x = jnp.asarray(x)
        if x.shape == (rows, cols) and x.dtype == dt:
            return x
        return jnp.zeros((rows, cols), dt).at[:x.shape[0], :x.shape[1]].set(x.astype(dt))

    return {
        "wp": pad2(params["wp"], Hp, Hp, compute_dtype),
        "bp": pad2(params["bp"], 1, Hp, jnp.float32),
        "w1": pad2(params["w1"], Hp, H2p, compute_dtype),
        "b1": pad2(params["b1"], 1, H2p, jnp.float32),
        "w2": pad2(params["w2"], H2p, Lp, compute_dtype),
        "b2": pad2(params["b2"], 1, Lp, jnp.float32),
        "dims": (H, H2, L, Hp, H2p, Lp),
    }


def _pick_tile_b(B):
    """Batch tile: big enough to amortize per-step overhead, split for dual-TC v7x."""
    if B >= 2048:
        tb = 1024
    elif B >= 512:
        tb = 512
    elif B >= 256:
        tb = 256
    else:
        tb = _round_up(B, 16)        # 16 sublanes (bf16-packed)
    Bp = _round_up(B, tb)
    # Ensure >= 2 grid steps when the tile is large enough to split, so the
    # "parallel" batch axis can shard across v7x's two TensorCores.
    if Bp // tb == 1 and tb >= 32:
        tb = _round_up(max(16, tb // 2), 16)
        Bp = _round_up(B, tb)
    return tb, Bp


# ---------------------------------------------------------------------------
# Pallas head (pooler + classifier) over pre-gathered CLS activations
# ---------------------------------------------------------------------------
def _qk_head_pallas(cls, prep):
    H, H2, L, Hp, H2p, Lp = prep["dims"]
    B = cls.shape[0]
    cdt = prep["wp"].dtype

    tile_b, Bp = _pick_tile_b(B)
    grid = (Bp // tile_b,)

    # Pad activations only when actually needed (standard BERT dims skip this).
    if (Bp, Hp) == (B, H):
        cls_p = cls.astype(cdt)
    else:
        cls_p = jnp.zeros((Bp, Hp), cdt).at[:B, :H].set(cls.astype(cdt))

    wbytes = jnp.dtype(cdt).itemsize
    weight_bytes = (prep["wp"].size + prep["w1"].size + prep["w2"].size) * wbytes
    bias_bytes = (prep["bp"].size + prep["b1"].size + prep["b2"].size) * 4
    # cls in (bf16) + pooled out (bf16) + logits out (f32), double-buffered;
    # weights/biases single-buffered via pl.Buffered(1).
    act_tile_bytes = tile_b * (Hp * 2 + Hp * 2 + Lp * 4)
    vmem_limit_bytes = int(min(
        48 * 2 ** 20,
        max(4 * 2 ** 20,
            weight_bytes + 2 * bias_bytes + 2 * act_tile_bytes + (4 << 20)),
    ))

    flops = 2 * Bp * (Hp * Hp + Hp * H2p + H2p * Lp)
    bytes_accessed = (cls_p.size * 2 + weight_bytes + bias_bytes
                      + Bp * Hp * 2 + Bp * Lp * 4)

    resident = dict(pipeline_mode=pl.Buffered(1))   # constant block, no double-buffer

    pooled_p, logits_p = pl.pallas_call(
        _qk_head_kernel,
        out_shape=(
            jax.ShapeDtypeStruct((Bp, Hp), jnp.bfloat16),
            jax.ShapeDtypeStruct((Bp, Lp), jnp.float32),
        ),
        grid_spec=pltpu.PrefetchScalarGridSpec(
            num_scalar_prefetch=0,
            grid=grid,
            in_specs=[
                pl.BlockSpec((tile_b, Hp), lambda i: (i, 0)),             # cls tile
                pl.BlockSpec((Hp, Hp), lambda i: (0, 0), **resident),     # Wp
                pl.BlockSpec((1, Hp), lambda i: (0, 0), **resident),      # bp
                pl.BlockSpec((Hp, H2p), lambda i: (0, 0), **resident),    # W1
                pl.BlockSpec((1, H2p), lambda i: (0, 0), **resident),     # b1
                pl.BlockSpec((H2p, Lp), lambda i: (0, 0), **resident),    # W2
                pl.BlockSpec((1, Lp), lambda i: (0, 0), **resident),      # b2
            ],
            out_specs=(
                pl.BlockSpec((tile_b, Hp), lambda i: (i, 0)),   # pooled (lane-dense)
                pl.BlockSpec((tile_b, Lp), lambda i: (i, 0)),   # logits (lane-dense)
            ),
        ),
        compiler_params=pltpu.CompilerParams(
            dimension_semantics=("parallel",),
            vmem_limit_bytes=vmem_limit_bytes,
        ),
        cost_estimate=pl.CostEstimate(
            flops=flops,
            transcendentals=Bp * Hp,
            bytes_accessed=bytes_accessed,
        ),
    )(cls_p, prep["wp"], prep["bp"], prep["w1"], prep["b1"], prep["w2"], prep["b2"])

    # Slice only when padding was actually applied.
    pooled = pooled_p if (Bp, Hp) == (B, H) else pooled_p[:B, :H]
    logits = logits_p if (Bp, Lp) == (B, L) else logits_p[:B, :L]
    return pooled, logits


# ---------------------------------------------------------------------------
# Full forward
# ---------------------------------------------------------------------------
def qk_model_forward(input_ids, attention_mask, params, prep=None, *,
                     force_pallas=False):
    """Forward pass of QKModel.

    input_ids      : [B, S] int32
    attention_mask : [B, S] int32 (unused by the simplified encoder stand-in)
    Returns (pooled_output [B, H] bf16, logits [B, num_labels] f32).
    """
    # TODO(synk): the pretrained transformer encoder body (self-attention stack) is not
    # implemented; the CLS hidden state comes from a deterministic embedding-lookup stand-in.
    del attention_mask
    emb = params["embedding"]                         # [vocab, H]
    # Gather ONLY the CLS-token rows (1 row per example instead of S rows).
    cls = jnp.take(emb, input_ids[:, 0], axis=0)      # [B, H]
    B, H = cls.shape

    # Tiny problems: the 128-lane padding would waste 16-40x MXU work and the call is
    # launch-overhead bound -> fall back to plain fused XLA unless forced.
    if not force_pallas and (H < 128 or B < 16):
        pooled = jnp.tanh(cls @ params["wp"] + params["bp"])
        logits = (jnp.maximum(pooled @ params["w1"] + params["b1"], 0.0)
                  @ params["w2"] + params["b2"])
        return pooled, logits

    if prep is None:
        prep = prepare_qk_params(params)
    return _qk_head_pallas(cls, prep)


def init_params(key, vocab_size, hidden_size, num_labels):
    """Deterministic nn.Linear-style (uniform) initialization, f32 master params."""
    ks = jax.random.split(key, 7)

    def linear_init(kw, kb, fan_in, fan_out):
        bound = 1.0 / jnp.sqrt(jnp.float32(fan_in))
        w = jax.random.uniform(kw, (fan_in, fan_out), jnp.float32, -bound, bound)
        b = jax.random.uniform(kb, (1, fan_out), jnp.float32, -bound, bound)
        return w, b

    emb = jax.random.normal(ks[0], (vocab_size, hidden_size), jnp.float32) * 0.02
    wp, bp = linear_init(ks[1], ks[2], hidden_size, hidden_size)
    w1, b1 = linear_init(ks[3], ks[4], hidden_size, hidden_size * 2)
    w2, b2 = linear_init(ks[5], ks[6], hidden_size * 2, num_labels)
    return {"embedding": emb, "wp": wp, "bp": bp,
            "w1": w1, "b1": b1, "w2": w2, "b2": b2}


if __name__ == "__main__":
    B, S, H = 2, 8, 32        # batch, seq len, hidden size
    vocab_size = 100
    num_labels = 3

    key = jax.random.PRNGKey(0)
    k_param, k_ids = jax.random.split(key)

    params = init_params(k_param, vocab_size, H, num_labels)
    input_ids = jax.random.randint(k_ids, (B, S), 0, vocab_size, dtype=jnp.int32)
    attention_mask = jnp.ones((B, S), dtype=jnp.int32)

    # One-time weight pad/cast (hoisted out of the per-call path).
    prep = prepare_qk_params(params)

    # force_pallas=True so the Pallas kernel is exercised even at these tiny test shapes.
    pooled, logits = qk_model_forward(input_ids, attention_mask, params, prep,
                                      force_pallas=True)
    jax.block_until_ready((pooled, logits))

    assert pooled.shape == (B, H) and logits.shape == (B, num_labels)

    # Plain-JAX f32 reference of the same math (kernel uses bf16 MXU operands and a bf16
    # pooled writeback, so allow bf16-level tolerance).
    cls = jnp.take(params["embedding"], input_ids[:, 0], axis=0)
    pooled_ref = jnp.tanh(cls @ params["wp"] + params["bp"])
    logits_ref = (jnp.maximum(pooled_ref @ params["w1"] + params["b1"], 0.0)
                  @ params["w2"] + params["b2"])
    assert jnp.allclose(pooled.astype(jnp.float32), pooled_ref, atol=2e-2), \
        float(jnp.max(jnp.abs(pooled.astype(jnp.float32) - pooled_ref)))
    assert jnp.allclose(logits, logits_ref, atol=2e-2), \
        float(jnp.max(jnp.abs(logits - logits_ref)))

    print("KERNEL_OK")
</pallas_src>

<mosaic_0001>
module attributes {stable_mosaic.version = 11 : i64} {
  func.func @_qk_head_kernel(%arg0: i32, %arg1: memref<16x128xbf16, #tpu.memory_space<vmem>>, %arg2: memref<128x128xbf16, #tpu.memory_space<vmem>>, %arg3: memref<1x128xf32, #tpu.memory_space<vmem>>, %arg4: memref<128x128xbf16, #tpu.memory_space<vmem>>, %arg5: memref<1x128xf32, #tpu.memory_space<vmem>>, %arg6: memref<128x128xbf16, #tpu.memory_space<vmem>>, %arg7: memref<1x128xf32, #tpu.memory_space<vmem>>, %arg8: memref<16x128xbf16, #tpu.memory_space<vmem>>, %arg9: memref<16x128xf32, #tpu.memory_space<vmem>>) attributes {dimension_semantics = [#tpu.dimension_semantics<parallel>], iteration_bounds = array<i64: 1>, scalar_prefetch = 0 : i64, scratch_operands = 0 : i64, tpu.core_type = #tpu.core_type<tc>, window_params = [{transform_indices = @transform_0, window_bounds = array<i64: 16, 128>}, {pipeline_mode = #tpu.pipeline_mode<synchronous>, transform_indices = @transform_1, window_bounds = array<i64: 128, 128>}, {pipeline_mode = #tpu.pipeline_mode<synchronous>, transform_indices = @transform_2, window_bounds = array<i64: 1, 128>}, {pipeline_mode = #tpu.pipeline_mode<synchronous>, transform_indices = @transform_3, window_bounds = array<i64: 128, 128>}, {pipeline_mode = #tpu.pipeline_mode<synchronous>, transform_indices = @transform_4, window_bounds = array<i64: 1, 128>}, {pipeline_mode = #tpu.pipeline_mode<synchronous>, transform_indices = @transform_5, window_bounds = array<i64: 128, 128>}, {pipeline_mode = #tpu.pipeline_mode<synchronous>, transform_indices = @transform_6, window_bounds = array<i64: 1, 128>}, {transform_indices = @transform_7, window_bounds = array<i64: 16, 128>}, {transform_indices = @transform_8, window_bounds = array<i64: 16, 128>}]} {
    %c0 = arith.constant 0 : index
    %c0_0 = arith.constant 0 : index
    %0 = vector.load %arg1[%c0, %c0_0] : memref<16x128xbf16, #tpu.memory_space<vmem>>, vector<16x128xbf16>
    %c0_1 = arith.constant 0 : index
    %c0_2 = arith.constant 0 : index
    %1 = vector.load %arg2[%c0_1, %c0_2] : memref<128x128xbf16, #tpu.memory_space<vmem>>, vector<128x128xbf16>
    %cst = arith.constant dense<0.000000e+00> : vector<16x128xf32>
    %2 = tpu.matmul %0, %1, %cst {dimension_numbers = #tpu.dot_dimension_numbers<[1], [0], [0], [1], [0, 0, 1, 1], [], []>} : vector<16x128xbf16>, vector<128x128xbf16>, vector<16x128xf32> -> vector<16x128xf32>
    %c0_3 = arith.constant 0 : index
    %c0_4 = arith.constant 0 : index
    %3 = vector.load %arg3[%c0_3, %c0_4] : memref<1x128xf32, #tpu.memory_space<vmem>>, vector<1x128xf32>
    %4 = vector.broadcast %3 : vector<1x128xf32> to vector<16x128xf32>
    %5 = arith.addf %2, %4 : vector<16x128xf32>
    %6 = math.tanh %5 : vector<16x128xf32>
    %7 = arith.truncf %6 : vector<16x128xf32> to vector<16x128xbf16>
    %c0_5 = arith.constant 0 : index
    %c0_6 = arith.constant 0 : index
    %8 = vector.load %arg8[%c0_5, %c0_6] : memref<16x128xbf16, #tpu.memory_space<vmem>>, vector<16x128xbf16>
    tpu.vector_store %arg8[%c0_5, %c0_6], %7 {strides = array<i32>} : memref<16x128xbf16, #tpu.memory_space<vmem>>, vector<16x128xbf16>,
    %c0_7 = arith.constant 0 : index
    %c0_8 = arith.constant 0 : index
    %9 = vector.load %arg4[%c0_7, %c0_8] : memref<128x128xbf16, #tpu.memory_space<vmem>>, vector<128x128xbf16>
    %cst_9 = arith.constant dense<0.000000e+00> : vector<16x128xf32>
    %10 = tpu.matmul %7, %9, %cst_9 {dimension_numbers = #tpu.dot_dimension_numbers<[1], [0], [0], [1], [0, 0, 1, 1], [], []>} : vector<16x128xbf16>, vector<128x128xbf16>, vector<16x128xf32> -> vector<16x128xf32>
    %c0_10 = arith.constant 0 : index
    %c0_11 = arith.constant 0 : index
    %11 = vector.load %arg5[%c0_10, %c0_11] : memref<1x128xf32, #tpu.memory_space<vmem>>, vector<1x128xf32>
    %12 = vector.broadcast %11 : vector<1x128xf32> to vector<16x128xf32>
    %13 = arith.addf %10, %12 : vector<16x128xf32>
    %cst_12 = arith.constant 0.000000e+00 : f32
    %14 = vector.broadcast %cst_12 : f32 to vector<16x128xf32>
    %15 = arith.maximumf %13, %14 : vector<16x128xf32>
    %16 = arith.truncf %15 : vector<16x128xf32> to vector<16x128xbf16>
    %c0_13 = arith.constant 0 : index
    %c0_14 = arith.constant 0 : index
    %17 = vector.load %arg6[%c0_13, %c0_14] : memref<128x128xbf16, #tpu.memory_space<vmem>>, vector<128x128xbf16>
    %cst_15 = arith.constant dense<0.000000e+00> : vector<16x128xf32>
    %18 = tpu.matmul %16, %17, %cst_15 {dimension_numbers = #tpu.dot_dimension_numbers<[1], [0], [0], [1], [0, 0, 1, 1], [], []>} : vector<16x128xbf16>, vector<128x128xbf16>, vector<16x128xf32> -> vector<16x128xf32>
    %c0_16 = arith.constant 0 : index
    %c0_17 = arith.constant 0 : index
    %19 = vector.load %arg7[%c0_16, %c0_17] : memref<1x128xf32, #tpu.memory_space<vmem>>, vector<1x128xf32>
    %20 = vector.broadcast %19 : vector<1x128xf32> to vector<16x128xf32>
    %21 = arith.addf %18, %20 : vector<16x128xf32>
    %c0_18 = arith.constant 0 : index
    %c0_19 = arith.constant 0 : index
    %22 = vector.load %arg9[%c0_18, %c0_19] : memref<16x128xf32, #tpu.memory_space<vmem>>, vector<16x128xf32>
    tpu.vector_store %arg9[%c0_18, %c0_19], %21 {strides = array<i32>} : memref<16x128xf32, #tpu.memory_space<vmem>>, vector<16x128xf32>,
    return
  }
  func.func @transform_0(%arg0: i32) -> (i32, i32) {
    %c0_i32 = arith.constant 0 : i32
    %c0_i32_0 = arith.constant 0 : i32
    return %arg0, %c0_i32 : i32, i32
  }
  func.func @transform_1(%arg0: i32) -> (i32, i32) {
    %c0_i32 = arith.constant 0 : i32
    %c0_i32_0 = arith.constant 0 : i32
    %c0_i32_1 = arith.constant 0 : i32
    return %c0_i32, %c0_i32_0 : i32, i32
  }
  func.func @transform_2(%arg0: i32) -> (i32, i32) {
    %c0_i32 = arith.constant 0 : i32
    %c0_i32_0 = arith.constant 0 : i32
    %c0_i32_1 = arith.constant 0 : i32
    return %c0_i32, %c0_i32_0 : i32, i32
  }
  func.func @transform_3(%arg0: i32) -> (i32, i32) {
    %c0_i32 = arith.constant 0 : i32
    %c0_i32_0 = arith.constant 0 : i32
    %c0_i32_1 = arith.constant 0 : i32
    return %c0_i32, %c0_i32_0 : i32, i32
  }
  func.func @transform_4(%arg0: i32) -> (i32, i32) {
    %c0_i32 = arith.constant 0 : i32
    %c0_i32_0 = arith.constant 0 : i32
    %c0_i32_1 = arith.constant 0 : i32
    return %c0_i32, %c0_i32_0 : i32, i32
  }
  func.func @transform_5(%arg0: i32) -> (i32, i32) {
    %c0_i32 = arith.constant 0 : i32
    %c0_i32_0 = arith.constant 0 : i32
    %c0_i32_1 = arith.constant 0 : i32
    return %c0_i32, %c0_i32_0 : i32, i32
  }
  func.func @transform_6(%arg0: i32) -> (i32, i32) {
    %c0_i32 = arith.constant 0 : i32
    %c0_i32_0 = arith.constant 0 : i32
    %c0_i32_1 = arith.constant 0 : i32
    return %c0_i32, %c0_i32_0 : i32, i32
  }
  func.func @transform_7(%arg0: i32) -> (i32, i32) {
    %c0_i32 = arith.constant 0 : i32
    %c0_i32_0 = arith.constant 0 : i32
    return %arg0, %c0_i32 : i32, i32
  }
  func.func @transform_8(%arg0: i32) -> (i32, i32) {
    %c0_i32 = arith.constant 0 : i32
    %c0_i32_0 = arith.constant 0 : i32
    return %arg0, %c0_i32 : i32, i32
  }
}

</mosaic_0001>

<llo_original>
// kernel: tpu_custom_call.1
$region0: #{tpu_custom_call.1}
  #allocation0 [shape = 'u32[]', space=smem, size = 0x4, offset = 0x4, fixed_abs, tag = 'smem constant byte address 0x4 - core index']
  #allocation1 [shape = 'u32[144,128]{1,0:T(1,128)}', space=vmem, size = 0x12000, scoped, tag = 'internal scratch']
  %s0 = inlined_call_operand.hbm [shape: bf16[16,128], index: 0, kind: input, shape index: {}]
  %s1 = inlined_call_operand.hbm [shape: bf16[128,128], index: 1, kind: input, shape index: {}]
  %s2 = inlined_call_operand.vmem [shape: f32[1,128], index: 2, kind: input, shape index: {}]
  %s3 = inlined_call_operand.hbm [shape: bf16[128,128], index: 3, kind: input, shape index: {}]
  %s4 = inlined_call_operand.vmem [shape: f32[1,128], index: 4, kind: input, shape index: {}]
  %s5 = inlined_call_operand.hbm [shape: bf16[128,128], index: 5, kind: input, shape index: {}]
  %s6 = inlined_call_operand.vmem [shape: f32[1,128], index: 6, kind: input, shape index: {}]
  %s7 = inlined_call_operand.hbm [shape: bf16[16,128], index: 7, kind: output, shape index: {0}]
  %s8 = inlined_call_operand.hbm [shape: f32[16,128], index: 8, kind: output, shape index: {1}]
  %9 = xla_tuple %s7, %s8
  %s10 = sld [smem:[#allocation0]]
  $region62: #{tpu_custom_call.1} parent=0
    _
  %s12 = ssub.s32 1, %s10
  %s13 = scalar_select 0, %s12, %s10
  $region1: #{tpu_custom_call.1} parent=0
    #allocation2 [shape = 'u8[4096]{0}', space=vmem, size = 0x1000, scoped, tag = 'input window, operand 0, single buffered']
    #allocation3 [shape = 's32[1]{0}', space=sflag, size = 0x4, scoped, tag = 'scoped memory for tpu_custom_call.1']
    #allocation4 [shape = 's32[1]{0}', space=sflag, size = 0x4, scoped, tag = 'scoped memory for tpu_custom_call.1']
    #allocation5 [shape = 'u8[32768]{0}', space=vmem, size = 0x8000, scoped, tag = 'input window, operand 1, single buffered']
    #allocation6 [shape = 's32[1]{0}', space=sflag, size = 0x4, scoped, tag = 'scoped memory for tpu_custom_call.1']
    #allocation7 [shape = 'u8[32768]{0}', space=vmem, size = 0x8000, scoped, tag = 'input window, operand 3, single buffered']
    #allocation8 [shape = 'u8[32768]{0}', space=vmem, size = 0x8000, scoped, tag = 'input window, operand 5, single buffered']
    #allocation9 [shape = 's32[1]{0}', space=sflag, size = 0x4, scoped, tag = 'scoped memory for tpu_custom_call.1']
    #allocation10 [shape = 'u8[4096]{0}', space=vmem, size = 0x1000, scoped, tag = 'output window, operand 0, single buffered']
    #allocation11 [shape = 'u8[8192]{0}', space=vmem, size = 0x2000, scoped, tag = 'output window, operand 1, single buffered']
    #allocation12 [shape = 's32[1]{0}', space=sflag, size = 0x4, scoped, tag = 'scoped memory for tpu_custom_call.1']
    %14 = vsyncpa [#allocation3], 0
    %15 = vsyncpa [#allocation6], 0
    %16 = vsyncpa [#allocation9], 0
    %17 = vsyncpa [#allocation4], 0
    %18 = vsyncpa [#allocation12], 0
    // Predicated region
    $region2: #{tpu_custom_call.1} parent=1 // pred_check
      _
    $region3: #{tpu_custom_call.1} parent=1 // pred_check_branch
      %20 = sbr.rel (0) target = $region5
    $region4: #{tpu_custom_call.1} parent=1 // pred_region
      %s22 = ssub.s32 128, 128
      %23 = vsyncadd [#allocation3], %s22
      %s24 = sshll.u32 [#allocation2], 4
      %s25 = int_to_ptr.vmem [resolvable:$true] %s24
      %30 = dma.hbm_to_vmem [thread:$0]  %s0, 128, %s25, [#allocation3], 64, 64, 4
    $region5: #{tpu_custom_call.1} parent=1 // pred_fallthru
      _
    // Predicated region
    $region6: #{tpu_custom_call.1} parent=1 // pred_check
      _
    $region7: #{tpu_custom_call.1} parent=1 // pred_check_branch
      %32 = sbr.rel (0) target = $region9
    $region8: #{tpu_custom_call.1} parent=1 // pred_region
      %s34 = ssub.s32 1024, 1024
      %35 = vsyncadd [#allocation6], %s34
      %s36 = sshll.u32 [#allocation5], 4
      %s37 = int_to_ptr.vmem [resolvable:$true] %s36
      %42 = dma.hbm_to_vmem [thread:$0]  %s1, 1024, %s37, [#allocation6], 64, 64, 4
    $region9: #{tpu_custom_call.1} parent=1 // pred_fallthru
      _
    // Predicated region
    $region10: #{tpu_custom_call.1} parent=1 // pred_check
      _
    $region11: #{tpu_custom_call.1} parent=1 // pred_check_branch
      %44 = sbr.rel (0) target = $region13
    $region12: #{tpu_custom_call.1} parent=1 // pred_region
      _
    $region13: #{tpu_custom_call.1} parent=1 // pred_fallthru
      _
    // Predicated region
    $region14: #{tpu_custom_call.1} parent=1 // pred_check
      _
    $region15: #{tpu_custom_call.1} parent=1 // pred_check_branch
      %46 = sbr.rel (0) target = $region17
    $region16: #{tpu_custom_call.1} parent=1 // pred_region
      %s48 = ssub.s32 1024, 1024
      %49 = vsyncadd [#allocation6], %s48
      %s50 = sshll.u32 [#allocation7], 4
      %s51 = int_to_ptr.vmem [resolvable:$true] %s50
      %56 = dma.hbm_to_vmem [thread:$0]  %s3, 1024, %s51, [#allocation6], 64, 64, 4
    $region17: #{tpu_custom_call.1} parent=1 // pred_fallthru
      _
    // Predicated region
    $region18: #{tpu_custom_call.1} parent=1 // pred_check
      _
    $region19: #{tpu_custom_call.1} parent=1 // pred_check_branch
      %58 = sbr.rel (0) target = $region21
    $region20: #{tpu_custom_call.1} parent=1 // pred_region
      _
    $region21: #{tpu_custom_call.1} parent=1 // pred_fallthru
      _
    // Predicated region
    $region22: #{tpu_custom_call.1} parent=1 // pred_check
      _
    $region23: #{tpu_custom_call.1} parent=1 // pred_check_branch
      %60 = sbr.rel (0) target = $region25
    $region24: #{tpu_custom_call.1} parent=1 // pred_region
      %s62 = ssub.s32 1024, 1024
      %63 = vsyncadd [#allocation9], %s62
      %s64 = sshll.u32 [#allocation8], 4
      %s65 = int_to_ptr.vmem [resolvable:$true] %s64
      %70 = dma.hbm_to_vmem [thread:$0]  %s5, 1024, %s65, [#allocation9], 64, 64, 4
    $region25: #{tpu_custom_call.1} parent=1 // pred_fallthru
      _
    // Predicated region
    $region26: #{tpu_custom_call.1} parent=1 // pred_check
      _
    $region27: #{tpu_custom_call.1} parent=1 // pred_check_branch
      %72 = sbr.rel (0) target = $region29
    $region28: #{tpu_custom_call.1} parent=1 // pred_region
      _
    $region29: #{tpu_custom_call.1} parent=1 // pred_fallthru
      _
    // Predicated region
    $region30: #{tpu_custom_call.1} parent=1 // pred_check
      _
    $region31: #{tpu_custom_call.1} parent=1 // pred_check_branch
      %74 = sbr.rel (0) target = $region33
    $region32: #{tpu_custom_call.1} parent=1 // pred_region
      %75 = dma.done [#allocation3], 128
    $region33: #{tpu_custom_call.1} parent=1 // pred_fallthru
      _
    // Predicated region
    $region34: #{tpu_custom_call.1} parent=1 // pred_check
      _
    $region35: #{tpu_custom_call.1} parent=1 // pred_check_branch
      %77 = sbr.rel (0) target = $region37
    $region36: #{tpu_custom_call.1} parent=1 // pred_region
      %78 = dma.done [#allocation6], 1024
    $region37: #{tpu_custom_call.1} parent=1 // pred_fallthru
      _
    // Predicated region
    $region38: #{tpu_custom_call.1} parent=1 // pred_check
      _
    $region39: #{tpu_custom_call.1} parent=1 // pred_check_branch
      %80 = sbr.rel (0) target = $region41
    $region40: #{tpu_custom_call.1} parent=1 // pred_region
      %81 = dma.done [#allocation6], 1024
    $region41: #{tpu_custom_call.1} parent=1 // pred_fallthru
      _
    // Predicated region
    $region42: #{tpu_custom_call.1} parent=1 // pred_check
      _
    $region43: #{tpu_custom_call.1} parent=1 // pred_check_branch
      %83 = sbr.rel (0) target = $region45
    $region44: #{tpu_custom_call.1} parent=1 // pred_region
      %84 = dma.done [#allocation9], 1024
    $region45: #{tpu_custom_call.1} parent=1 // pred_fallthru
      _
    %v86 = vld [vmem:[#allocation2] sm:$0xf]
    %v87 = vld [vmem:[#allocation2 + $0x4] sm:$0xf]
    %v88 = vld [vmem:[#allocation5] sm:$0xf]
    %v89 = vld [vmem:[#allocation5 + $0x4] sm:$0xf]
    %v90 = vld [vmem:[#allocation5 + $0x8] sm:$0xf]
    %v91 = vld [vmem:[#allocation5 + $0xc] sm:$0xf]
    %v92 = vld [vmem:[#allocation5 + $0x10] sm:$0xf]
    %v93 = vld [vmem:[#allocation5 + $0x14] sm:$0xf]
    %v94 = vld [vmem:[#allocation5 + $0x18] sm:$0xf]
    %v95 = vld [vmem:[#allocation5 + $0x1c] sm:$0xf]
    %v96 = vld [vmem:[#allocation5 + $0x20] sm:$0xf]
    %v97 = vld [vmem:[#allocation5 + $0x24] sm:$0xf]
    %v98 = vld [vmem:[#allocation5 + $0x28] sm:$0xf]
    %v99 = vld [vmem:[#allocation5 + $0x2c] sm:$0xf]
    %v100 = vld [vmem:[#allocation5 + $0x30] sm:$0xf]
    %v101 = vld [vmem:[#allocation5 + $0x34] sm:$0xf]
    %v102 = vld [vmem:[#allocation5 + $0x38] sm:$0xf]
    %v103 = vld [vmem:[#allocation5 + $0x3c] sm:$0xf]
    %v104 = vld [vmem:[%s2] sm:$0x1]
    %v106 = vlaneseq
    %v107 = vshrl.u32 %v106, 7
    %v108 = vsub.s32 0, %v107
    %v109 = vrot.slane %v104, %v108
    %v113 = vunpack.c.l.b16 %v86
    %v114 = vunpack.c.l.b16 %v87
    %v115 = vpack.c.b16 %v114, %v113
    %v133 = vunpack.c.l.b16 %v88
    %v134 = vunpack.c.l.b16 %v89
    %v135 = vunpack.c.l.b16 %v90
    %v136 = vunpack.c.l.b16 %v91
    %v137 = vunpack.c.l.b16 %v92
    %v138 = vunpack.c.l.b16 %v93
    %v139 = vunpack.c.l.b16 %v94
    %v140 = vunpack.c.l.b16 %v95
    %v141 = vunpack.c.l.b16 %v96
    %v142 = vunpack.c.l.b16 %v97
    %v143 = vunpack.c.l.b16 %v98
    %v144 = vunpack.c.l.b16 %v99
    %v145 = vunpack.c.l.b16 %v100
    %v146 = vunpack.c.l.b16 %v101
    %v147 = vunpack.c.l.b16 %v102
    %v148 = vunpack.c.l.b16 %v103
    %v149 = vpack.c.b16 %v134, %v133
    %v150 = vpack.c.b16 %v136, %v135
    %v151 = vpack.c.b16 %v138, %v137
    %v152 = vpack.c.b16 %v140, %v139
    %v153 = vpack.c.b16 %v142, %v141
    %v154 = vpack.c.b16 %v144, %v143
    %v155 = vpack.c.b16 %v146, %v145
    %v156 = vpack.c.b16 %v148, %v147
    %165 = vmatprep.subr.bf16.mxu0 0
    %166 = vmatpush1.bf16.msra.mxu0 %v156
    %167 = vmatprep.subr.bf16.mxu0 0
    %168 = vmatpush1.bf16.msra.mxu0 %v155
    %169 = vmatprep.subr.bf16.mxu0 0
    %170 = vmatpush1.bf16.msra.mxu0 %v154
    %171 = vmatprep.subr.bf16.mxu0 0
    %172 = vmatpush1.bf16.msra.mxu0 %v153
    %173 = vmatprep.subr.bf16.mxu0 0
    %174 = vmatpush1.bf16.msra.mxu0 %v152
    %175 = vmatprep.subr.bf16.mxu0 0
    %176 = vmatpush1.bf16.msra.mxu0 %v151
    %177 = vmatprep.subr.bf16.mxu0 0
    %178 = vmatpush1.bf16.msra.mxu0 %v150
    %179 = vmatprep.subr.bf16.mxu0 0
    %180 = vmatpush1.bf16.msra.mxu0 %v149
    %181 = vmatprep.subr.bf16.mxu0 0
    %182 = vmatpush2.bf16.msra.mxu0 0
    %183 = vmatprep.subr.bf16.mxu0 0
    %184 = vmatpush2.bf16.msra.mxu0 0
    %185 = vmatprep.subr.bf16.mxu0 0
    %186 = vmatpush2.bf16.msra.mxu0 0
    %187 = vmatprep.subr.bf16.mxu0 0
    %188 = vmatpush2.bf16.msra.mxu0 0
    %189 = vmatprep.subr.bf16.mxu0 0
    %190 = vmatpush2.bf16.msra.mxu0 0
    %191 = vmatprep.subr.bf16.mxu0 0
    %192 = vmatpush2.bf16.msra.mxu0 0
    %193 = vmatprep.subr.bf16.mxu0 0
    %194 = vmatpush2.bf16.msra.mxu0 0
    %195 = vmatprep.subr.bf16.mxu0 0
    %196 = vmatpush2.bf16.msra.mxu0 0
    %197 = vmatprep.mubr.bf16.mxu0 0
    %198 = vmatmul.mubr.bf16.gmra.mxu0 %v115
    %v199 = vpop.f32.mrf.mxu0
    %v200 = vadd.f32 %v109, %v199
    %v201 = vpop.f32.mrf.mxu0
    %v202 = vpop.f32.mrf.mxu0
    %v203 = vadd.f32 %v109, %v202
    %v204 = vpop.f32.mrf.mxu0
    %205 = vdwg.mxu0
    %v206 = vtanh.pop %v200
    %v207 = vtanh.pop %v203
    %v208 = vpack.c.bf16 %v207, %v206
    %v210 = vunpack.c.l.b16 %v208
    %v211 = vunpack.c.h.b16 %v208
    %v212 = vpack.c.b16 %v210, %v210
    %v213 = vpack.c.b16 %v211, %v211
    %216 = vst [vmem:[#allocation10] sm:$0xf] %v212
    %217 = vst [vmem:[#allocation10 + $0x4] sm:$0xf] %v213
    %v218 = vld [vmem:[#allocation7] sm:$0xf]
    %v219 = vld [vmem:[#allocation7 + $0x4] sm:$0xf]
    %v220 = vld [vmem:[#allocation7 + $0x8] sm:$0xf]
    %v221 = vld [vmem:[#allocation7 + $0xc] sm:$0xf]
    %v222 = vld [vmem:[#allocation7 + $0x10] sm:$0xf]
    %v223 = vld [vmem:[#allocation7 + $0x14] sm:$0xf]
    %v224 = vld [vmem:[#allocation7 + $0x18] sm:$0xf]
    %v225 = vld [vmem:[#allocation7 + $0x1c] sm:$0xf]
    %v226 = vld [vmem:[#allocation7 + $0x20] sm:$0xf]
    %v227 = vld [vmem:[#allocation7 + $0x24] sm:$0xf]
    %v228 = vld [vmem:[#allocation7 + $0x28] sm:$0xf]
    %v229 = vld [vmem:[#allocation7 + $0x2c] sm:$0xf]
    %v230 = vld [vmem:[#allocation7 + $0x30] sm:$0xf]
    %v231 = vld [vmem:[#allocation7 + $0x34] sm:$0xf]
    %v232 = vld [vmem:[#allocation7 + $0x38] sm:$0xf]
    %v233 = vld [vmem:[#allocation7 + $0x3c] sm:$0xf]
    %v234 = vld [vmem:[%s4] sm:$0x1]
    %v236 = vlaneseq
    %v237 = vshrl.u32 %v236, 7
    %v238 = vsub.s32 0, %v237
    %v239 = vrot.slane %v234, %v238
    %v257 = vunpack.c.l.b16 %v218
    %v258 = vunpack.c.l.b16 %v219
    %v259 = vunpack.c.l.b16 %v220
    %v260 = vunpack.c.l.b16 %v221
    %v261 = vunpack.c.l.b16 %v222
    %v262 = vunpack.c.l.b16 %v223
    %v263 = vunpack.c.l.b16 %v224
    %v264 = vunpack.c.l.b16 %v225
    %v265 = vunpack.c.l.b16 %v226
    %v266 = vunpack.c.l.b16 %v227
    %v267 = vunpack.c.l.b16 %v228
    %v268 = vunpack.c.l.b16 %v229
    %v269 = vunpack.c.l.b16 %v230
    %v270 = vunpack.c.l.b16 %v231
    %v271 = vunpack.c.l.b16 %v232
    %v272 = vunpack.c.l.b16 %v233
    %v273 = vpack.c.b16 %v258, %v257
    %v274 = vpack.c.b16 %v260, %v259
    %v275 = vpack.c.b16 %v262, %v261
    %v276 = vpack.c.b16 %v264, %v263
    %v277 = vpack.c.b16 %v266, %v265
    %v278 = vpack.c.b16 %v268, %v267
    %v279 = vpack.c.b16 %v270, %v269
    %v280 = vpack.c.b16 %v272, %v271
    %289 = vmatprep.subr.bf16.mxu0 0
    %290 = vmatpush1.bf16.msra.mxu0 %v280
    %291 = vmatprep.subr.bf16.mxu0 0
    %292 = vmatpush1.bf16.msra.mxu0 %v279
    %293 = vmatprep.subr.bf16.mxu0 0
    %294 = vmatpush1.bf16.msra.mxu0 %v278
    %295 = vmatprep.subr.bf16.mxu0 0
    %296 = vmatpush1.bf16.msra.mxu0 %v277
    %297 = vmatprep.subr.bf16.mxu0 0
    %298 = vmatpush1.bf16.msra.mxu0 %v276
    %299 = vmatprep.subr.bf16.mxu0 0
    %300 = vmatpush1.bf16.msra.mxu0 %v275
    %301 = vmatprep.subr.bf16.mxu0 0
    %302 = vmatpush1.bf16.msra.mxu0 %v274
    %303 = vmatprep.subr.bf16.mxu0 0
    %304 = vmatpush1.bf16.msra.mxu0 %v273
    %305 = vmatprep.subr.bf16.mxu0 0
    %306 = vmatpush2.bf16.msra.mxu0 0
    %307 = vmatprep.subr.bf16.mxu0 0
    %308 = vmatpush2.bf16.msra.mxu0 0
    %309 = vmatprep.subr.bf16.mxu0 0
    %310 = vmatpush2.bf16.msra.mxu0 0
    %311 = vmatprep.subr.bf16.mxu0 0
    %312 = vmatpush2.bf16.msra.mxu0 0
    %313 = vmatprep.subr.bf16.mxu0 0
    %314 = vmatpush2.bf16.msra.mxu0 0
    %315 = vmatprep.subr.bf16.mxu0 0
    %316 = vmatpush2.bf16.msra.mxu0 0
    %317 = vmatprep.subr.bf16.mxu0 0
    %318 = vmatpush2.bf16.msra.mxu0 0
    %319 = vmatprep.subr.bf16.mxu0 0
    %320 = vmatpush2.bf16.msra.mxu0 0
    %321 = vmatprep.mubr.bf16.mxu0 0
    %322 = vmatmul.mubr.bf16.gmra.mxu0 %v208
    %v323 = vpop.f32.mrf.mxu0
    %v324 = vadd.f32 %v239, %v323
    %v325 = vpop.f32.mrf.mxu0
    %v326 = vpop.f32.mrf.mxu0
    %v327 = vadd.f32 %v239, %v326
    %v328 = vpop.f32.mrf.mxu0
    %329 = vdwg.mxu0
    %v330 = vmax.f32 %v324, 0.0
    %v331 = vmax.f32 %v327, 0.0
    %v332 = vpack.c.bf16 %v331, %v330
    %v333 = vld [vmem:[#allocation8] sm:$0xf]
    %v334 = vld [vmem:[#allocation8 + $0x4] sm:$0xf]
    %v335 = vld [vmem:[#allocation8 + $0x8] sm:$0xf]
    %v336 = vld [vmem:[#allocation8 + $0xc] sm:$0xf]
    %v337 = vld [vmem:[#allocation8 + $0x10] sm:$0xf]
    %v338 = vld [vmem:[#allocation8 + $0x14] sm:$0xf]
    %v339 = vld [vmem:[#allocation8 + $0x18] sm:$0xf]
    %v340 = vld [vmem:[#allocation8 + $0x1c] sm:$0xf]
    %v341 = vld [vmem:[#allocation8 + $0x20] sm:$0xf]
    %v342 = vld [vmem:[#allocation8 + $0x24] sm:$0xf]
    %v343 = vld [vmem:[#allocation8 + $0x28] sm:$0xf]
    %v344 = vld [vmem:[#allocation8 + $0x2c] sm:$0xf]
    %v345 = vld [vmem:[#allocation8 + $0x30] sm:$0xf]
    %v346 = vld [vmem:[#allocation8 + $0x34] sm:$0xf]
    %v347 = vld [vmem:[#allocation8 + $0x38] sm:$0xf]
    %v348 = vld [vmem:[#allocation8 + $0x3c] sm:$0xf]
    %v349 = vld [vmem:[%s6] sm:$0x1]
    %v351 = vlaneseq
    %v352 = vshrl.u32 %v351, 7
    %v353 = vsub.s32 0, %v352
    %v354 = vrot.slane %v349, %v353
    %v372 = vunpack.c.l.b16 %v333
    %v373 = vunpack.c.l.b16 %v334
    %v374 = vunpack.c.l.b16 %v335
    %v375 = vunpack.c.l.b16 %v336
    %v376 = vunpack.c.l.b16 %v337
    %v377 = vunpack.c.l.b16 %v338
    %v378 = vunpack.c.l.b16 %v339
    %v379 = vunpack.c.l.b16 %v340
    %v380 = vunpack.c.l.b16 %v341
    %v381 = vunpack.c.l.b16 %v342
    %v382 = vunpack.c.l.b16 %v343
    %v383 = vunpack.c.l.b16 %v344
    %v384 = vunpack.c.l.b16 %v345
    %v385 = vunpack.c.l.b16 %v346
    %v386 = vunpack.c.l.b16 %v347
    %v387 = vunpack.c.l.b16 %v348
    %v388 = vpack.c.b16 %v373, %v372
    %v389 = vpack.c.b16 %v375, %v374
    %v390 = vpack.c.b16 %v377, %v376
    %v391 = vpack.c.b16 %v379, %v378
    %v392 = vpack.c.b16 %v381, %v380
    %v393 = vpack.c.b16 %v383, %v382
    %v394 = vpack.c.b16 %v385, %v384
    %v395 = vpack.c.b16 %v387, %v386
    %404 = vmatprep.subr.bf16.mxu0 0
    %405 = vmatpush1.bf16.msra.mxu0 %v395
    %406 = vmatprep.subr.bf16.mxu0 0
    %407 = vmatpush1.bf16.msra.mxu0 %v394
    %408 = vmatprep.subr.bf16.mxu0 0
    %409 = vmatpush1.bf16.msra.mxu0 %v393
    %410 = vmatprep.subr.bf16.mxu0 0
    %411 = vmatpush1.bf16.msra.mxu0 %v392
    %412 = vmatprep.subr.bf16.mxu0 0
    %413 = vmatpush1.bf16.msra.mxu0 %v391
    %414 = vmatprep.subr.bf16.mxu0 0
    %415 = vmatpush1.bf16.msra.mxu0 %v390
    %416 = vmatprep.subr.bf16.mxu0 0
    %417 = vmatpush1.bf16.msra.mxu0 %v389
    %418 = vmatprep.subr.bf16.mxu0 0
    %419 = vmatpush1.bf16.msra.mxu0 %v388
    %420 = vmatprep.subr.bf16.mxu0 0
    %421 = vmatpush2.bf16.msra.mxu0 0
    %422 = vmatprep.subr.bf16.mxu0 0
    %423 = vmatpush2.bf16.msra.mxu0 0
    %424 = vmatprep.subr.bf16.mxu0 0
    %425 = vmatpush2.bf16.msra.mxu0 0
    %426 = vmatprep.subr.bf16.mxu0 0
    %427 = vmatpush2.bf16.msra.mxu0 0
    %428 = vmatprep.subr.bf16.mxu0 0
    %429 = vmatpush2.bf16.msra.mxu0 0
    %430 = vmatprep.subr.bf16.mxu0 0
    %431 = vmatpush2.bf16.msra.mxu0 0
    %432 = vmatprep.subr.bf16.mxu0 0
    %433 = vmatpush2.bf16.msra.mxu0 0
    %434 = vmatprep.subr.bf16.mxu0 0
    %435 = vmatpush2.bf16.msra.mxu0 0
    %436 = vmatprep.mubr.bf16.mxu0 0
    %437 = vmatmul.mubr.bf16.gmra.mxu0 %v332
    %v438 = vpop.f32.mrf.mxu0
    %v439 = vadd.f32 %v354, %v438
    %v440 = vpop.f32.mrf.mxu0
    %v441 = vpop.f32.mrf.mxu0
    %v442 = vadd.f32 %v354, %v441
    %v443 = vpop.f32.mrf.mxu0
    %444 = vdwg.mxu0
    %445 = vst [vmem:[#allocation11] sm:$0xff] %v439
    %446 = vst [vmem:[#allocation11 + $0x8] sm:$0xff] %v442
    // Predicated region
    $region46: #{tpu_custom_call.1} parent=1 // pred_check
      _
    $region47: #{tpu_custom_call.1} parent=1 // pred_check_branch
      %448 = sbr.rel (0) target = $region49
    $region48: #{tpu_custom_call.1} parent=1 // pred_region
      %s450 = ssub.s32 128, 128
      %451 = vsyncadd [#allocation4], %s450
      %s452 = sshll.u32 [#allocation10], 4
      %s453 = int_to_ptr.vmem [resolvable:$true] %s452
      %458 = dma.vmem_to_hbm [thread:$0]  %s453, 128, %s7, [#allocation4], 64, 64, 4
    $region49: #{tpu_custom_call.1} parent=1 // pred_fallthru
      _
    // Predicated region
    $region50: #{tpu_custom_call.1} parent=1 // pred_check
      _
    $region51: #{tpu_custom_call.1} parent=1 // pred_check_branch
      %460 = sbr.rel (0) target = $region53
    $region52: #{tpu_custom_call.1} parent=1 // pred_region
      %s462 = ssub.s32 256, 256
      %463 = vsyncadd [#allocation12], %s462
      %s464 = sshll.u32 [#allocation11], 4
      %s465 = int_to_ptr.vmem [resolvable:$true] %s464
      %470 = dma.vmem_to_hbm [thread:$0]  %s465, 256, %s8, [#allocation12], 128, 128, 8
    $region53: #{tpu_custom_call.1} parent=1 // pred_fallthru
      _
    // Predicated region
    $region54: #{tpu_custom_call.1} parent=1 // pred_check
      _
    $region55: #{tpu_custom_call.1} parent=1 // pred_check_branch
      %472 = sbr.rel (0) target = $region57
    $region56: #{tpu_custom_call.1} parent=1 // pred_region
      %473 = dma.done [#allocation4], 128
    $region57: #{tpu_custom_call.1} parent=1 // pred_fallthru
      _
    // Predicated region
    $region58: #{tpu_custom_call.1} parent=1 // pred_check
      _
    $region59: #{tpu_custom_call.1} parent=1 // pred_check_branch
      %475 = sbr.rel (0) target = $region61
    $region60: #{tpu_custom_call.1} parent=1 // pred_region
      %476 = dma.done [#allocation12], 256
    $region61: #{tpu_custom_call.1} parent=1 // pred_fallthru
      _
    %477 = vsyncpa [#allocation3], 1
    %478 = vsyncpa [#allocation6], 1
    %479 = vsyncpa [#allocation9], 1
    %480 = vsyncpa [#allocation4], 1
    %481 = vsyncpa [#allocation12], 1

</llo_original>
